<compile_context>
chip_gen: v5e
topology: v5e:2x2
jax: 0.10.0
libtpu: 0.0.40
codegen_flags: <defaults>
</compile_context>

<pallas_src>
import functools

import jax
import jax.numpy as jnp
from jax.experimental import pallas as pl
from jax.experimental.pallas import tpu as pltpu

LANES = 128        # lane-dense output width
V_COL = LANES - 1  # value column lives in the last lane


def _leaky_relu(x, slope=0.01):
    # nn.LeakyReLU() default negative_slope = 0.01
    return jnp.where(x >= 0, x, slope * x)


def dueling_dqn_kernel(
    x_ref,                  # (Bt, input_dim)
    w1_ref, b1_ref,         # Linear(input_dim -> 32)
    w2_ref, b2_ref,         # Linear(32 -> 64)
    wva_ref, bva_ref,       # fused value/adv first layer: Linear(64 -> 64)
    wout_ref, bout_ref,     # fused value/adv second layer: Linear(64 -> 128), lane-dense
    out_ref,                # (Bt, 128)
    *, inv_out_dim,
):
    x = x_ref[...]

    # feature layer
    h = _leaky_relu(
        jnp.dot(x, w1_ref[...], preferred_element_type=jnp.float32) + b1_ref[...]
    )
    feat = _leaky_relu(
        jnp.dot(h, w2_ref[...], preferred_element_type=jnp.float32) + b2_ref[...]
    )

    # fused value/advantage hidden layer: cols 0..31 = value stream, 32..63 = advantage.
    h_va = _leaky_relu(
        jnp.dot(feat, wva_ref[...], preferred_element_type=jnp.float32) + bva_ref[...]
    )

    # fused, lane-dense final layer: cols 0..out_dim-1 = A, col 127 = V, rest exactly 0.
    z = jnp.dot(h_va, wout_ref[...], preferred_element_type=jnp.float32) + bout_ref[...]

    values = z[:, V_COL:V_COL + 1]                              # (Bt, 1)
    # padded columns are exact zeros -> sum over all lanes = V + sum(A)  (XLU reduce)
    adv_sum = jnp.sum(z, axis=1, keepdims=True) - values
    adv_mean = adv_sum * inv_out_dim                            # constant mul, no divide

    # Q lives in columns 0..out_dim-1; remaining columns are garbage, sliced off by caller.
    out_ref[...] = values + (z - adv_mean)


def _prepare_fused_params(p, out_dim):
    """Fuse / pad the 12 raw Linear params into 8 lane-friendly slabs."""
    w_va = jnp.concatenate([p["wv1"], p["wa1"]], axis=1)        # (64, 64)
    b_va = jnp.concatenate([p["bv1"], p["ba1"]], axis=1)        # (1, 64)

    w_out = jnp.zeros((64, LANES), jnp.float32)
    w_out = w_out.at[32:64, 0:out_dim].set(p["wa2"])            # advantage columns (prefix)
    w_out = w_out.at[0:32, V_COL:V_COL + 1].set(p["wv2"])       # value column (last lane)
    b_out = jnp.zeros((1, LANES), jnp.float32)
    b_out = b_out.at[:, 0:out_dim].set(p["ba2"])
    b_out = b_out.at[:, V_COL:V_COL + 1].set(p["bv2"])

    return dict(w1=p["w1"], b1=p["b1"], w2=p["w2"], b2=p["b2"],
                w_va=w_va, b_va=b_va, w_out=w_out, b_out=b_out)


def dueling_dqn_forward(state, params, out_dim, *, batch_tile=1024):
    """state: (B, input_dim) f32; params: raw per-layer dict. Returns (B, out_dim) Q-values."""
    B, in_dim = state.shape
    fused = _prepare_fused_params(params, out_dim)

    # Batch tile: multiple of 8 (sublane), capped by requested tile; pad B up to a multiple.
    b_pad8 = ((B + 7) // 8) * 8
    b_tile = max(8, (min(batch_tile, b_pad8) // 8) * 8)
    B_padded = pl.cdiv(B, b_tile) * b_tile
    if B_padded != B:
        state = jnp.pad(state, ((0, B_padded - B), (0, 0)))

    grid = (B_padded // b_tile,)
    const = lambda i: (0, 0)  # weights/biases: fetched once, VMEM-resident across steps

    in_specs = [
        pl.BlockSpec((b_tile, in_dim), lambda i: (i, 0)),       # state: pipelined over batch
        pl.BlockSpec(fused["w1"].shape, const),
        pl.BlockSpec(fused["b1"].shape, const),
        pl.BlockSpec(fused["w2"].shape, const),
        pl.BlockSpec(fused["b2"].shape, const),
        pl.BlockSpec(fused["w_va"].shape, const),
        pl.BlockSpec(fused["b_va"].shape, const),
        pl.BlockSpec(fused["w_out"].shape, const),
        pl.BlockSpec(fused["b_out"].shape, const),
    ]
    out_spec = pl.BlockSpec((b_tile, LANES), lambda i: (i, 0))  # lane-dense output slab

    kernel = functools.partial(dueling_dqn_kernel, inv_out_dim=1.0 / out_dim)

    q_full = pl.pallas_call(
        kernel,
        out_shape=jax.ShapeDtypeStruct((B_padded, LANES), jnp.float32),
        grid=grid,
        in_specs=in_specs,
        out_specs=out_spec,
        compiler_params=pltpu.CompilerParams(
            dimension_semantics=("parallel",),                  # v7x: shard batch over 2 TCs
        ),
    )(state, fused["w1"], fused["b1"], fused["w2"], fused["b2"],
      fused["w_va"], fused["b_va"], fused["w_out"], fused["b_out"])

    # Q-values live in the leading out_dim columns of the lane-dense slab.
    return q_full[:B, :out_dim]


def init_params(key, input_dim, output_dim):
    """Deterministic synthetic parameters (not a checkpoint load)."""
    dims = [
        ("w1", (input_dim, 32)), ("b1", (1, 32)),
        ("w2", (32, 64)), ("b2", (1, 64)),
        ("wv1", (64, 32)), ("bv1", (1, 32)),
        ("wv2", (32, 1)), ("bv2", (1, 1)),
        ("wa1", (64, 32)), ("ba1", (1, 32)),
        ("wa2", (32, output_dim)), ("ba2", (1, output_dim)),
    ]
    params = {}
    keys = jax.random.split(key, len(dims))
    for (name, shape), k in zip(dims, keys):
        params[name] = jax.random.normal(k, shape, dtype=jnp.float32) * 0.1
    return params


def reference_forward(state, p):
    """Plain-JAX reference (mirrors the PyTorch module exactly)."""
    def lrelu(z):
        return jnp.where(z >= 0, z, 0.01 * z)
    h = lrelu(state @ p["w1"] + p["b1"])
    feat = lrelu(h @ p["w2"] + p["b2"])
    v = lrelu(feat @ p["wv1"] + p["bv1"]) @ p["wv2"] + p["bv2"]
    a = lrelu(feat @ p["wa1"] + p["ba1"]) @ p["wa2"] + p["ba2"]
    return v + (a - jnp.mean(a, axis=1, keepdims=True))


if __name__ == "__main__":
    key = jax.random.PRNGKey(0)
    k_x, k_p = jax.random.split(key)

    B = 8
    input_dim = 16
    output_dim = 8

    state = jax.random.normal(k_x, (B, input_dim), dtype=jnp.float32)
    params = init_params(k_p, input_dim, output_dim)

    qvals = dueling_dqn_forward(state, params, output_dim)
    qvals = jax.block_until_ready(qvals)

    ref = reference_forward(state, params)
    assert qvals.shape == (B, output_dim)
    assert jnp.allclose(qvals, ref, atol=1e-4, rtol=1e-4)

    print("KERNEL_OK")
</pallas_src>

<mosaic_0001>
module attributes {stable_mosaic.version = 11 : i64} {
  func.func @dueling_dqn_kernel(%arg0: i32, %arg1: memref<8x16xf32, #tpu.memory_space<vmem>>, %arg2: memref<16x32xf32, #tpu.memory_space<vmem>>, %arg3: memref<1x32xf32, #tpu.memory_space<vmem>>, %arg4: memref<32x64xf32, #tpu.memory_space<vmem>>, %arg5: memref<1x64xf32, #tpu.memory_space<vmem>>, %arg6: memref<64x64xf32, #tpu.memory_space<vmem>>, %arg7: memref<1x64xf32, #tpu.memory_space<vmem>>, %arg8: memref<64x128xf32, #tpu.memory_space<vmem>>, %arg9: memref<1x128xf32, #tpu.memory_space<vmem>>, %arg10: memref<8x128xf32, #tpu.memory_space<vmem>>) attributes {dimension_semantics = [#tpu.dimension_semantics<parallel>], iteration_bounds = array<i64: 1>, scalar_prefetch = 0 : i64, scratch_operands = 0 : i64, tpu.core_type = #tpu.core_type<tc>, window_params = [{transform_indices = @transform_0, window_bounds = array<i64: 8, 16>}, {pipeline_mode = #tpu.pipeline_mode<synchronous>, transform_indices = @transform_1, window_bounds = array<i64: 16, 32>}, {pipeline_mode = #tpu.pipeline_mode<synchronous>, transform_indices = @transform_2, window_bounds = array<i64: 1, 32>}, {pipeline_mode = #tpu.pipeline_mode<synchronous>, transform_indices = @transform_3, window_bounds = array<i64: 32, 64>}, {pipeline_mode = #tpu.pipeline_mode<synchronous>, transform_indices = @transform_4, window_bounds = array<i64: 1, 64>}, {pipeline_mode = #tpu.pipeline_mode<synchronous>, transform_indices = @transform_5, window_bounds = array<i64: 64, 64>}, {pipeline_mode = #tpu.pipeline_mode<synchronous>, transform_indices = @transform_6, window_bounds = array<i64: 1, 64>}, {pipeline_mode = #tpu.pipeline_mode<synchronous>, transform_indices = @transform_7, window_bounds = array<i64: 64, 128>}, {pipeline_mode = #tpu.pipeline_mode<synchronous>, transform_indices = @transform_8, window_bounds = array<i64: 1, 128>}, {transform_indices = @transform_9, window_bounds = array<i64: 8, 128>}]} {
    %c0 = arith.constant 0 : index
    %c0_0 = arith.constant 0 : index
    %0 = vector.load %arg1[%c0, %c0_0] : memref<8x16xf32, #tpu.memory_space<vmem>>, vector<8x16xf32>
    %c0_1 = arith.constant 0 : index
    %c0_2 = arith.constant 0 : index
    %1 = vector.load %arg2[%c0_1, %c0_2] : memref<16x32xf32, #tpu.memory_space<vmem>>, vector<16x32xf32>
    %cst = arith.constant dense<0.000000e+00> : vector<8x32xf32>
    %2 = tpu.matmul %0, %1, %cst {dimension_numbers = #tpu.dot_dimension_numbers<[1], [0], [0], [1], [0, 0, 1, 1], [], []>} : vector<8x16xf32>, vector<16x32xf32>, vector<8x32xf32> -> vector<8x32xf32>
    %c0_3 = arith.constant 0 : index
    %c0_4 = arith.constant 0 : index
    %3 = vector.load %arg3[%c0_3, %c0_4] : memref<1x32xf32, #tpu.memory_space<vmem>>, vector<1x32xf32>
    %4 = vector.broadcast %3 : vector<1x32xf32> to vector<8x32xf32>
    %5 = arith.addf %2, %4 : vector<8x32xf32>
    %cst_5 = arith.constant 0.000000e+00 : f32
    %6 = vector.broadcast %cst_5 : f32 to vector<8x32xf32>
    %7 = arith.cmpf oge, %5, %6 : vector<8x32xf32>
    %cst_6 = arith.constant 0.00999999977 : f32
    %8 = vector.broadcast %cst_6 : f32 to vector<8x32xf32>
    %9 = arith.mulf %8, %5 : vector<8x32xf32>
    %10 = arith.select %7, %5, %9 : vector<8x32xi1>, vector<8x32xf32>
    %c0_7 = arith.constant 0 : index
    %c0_8 = arith.constant 0 : index
    %11 = vector.load %arg4[%c0_7, %c0_8] : memref<32x64xf32, #tpu.memory_space<vmem>>, vector<32x64xf32>
    %cst_9 = arith.constant dense<0.000000e+00> : vector<8x64xf32>
    %12 = tpu.matmul %10, %11, %cst_9 {dimension_numbers = #tpu.dot_dimension_numbers<[1], [0], [0], [1], [0, 0, 1, 1], [], []>} : vector<8x32xf32>, vector<32x64xf32>, vector<8x64xf32> -> vector<8x64xf32>
    %c0_10 = arith.constant 0 : index
    %c0_11 = arith.constant 0 : index
    %13 = vector.load %arg5[%c0_10, %c0_11] : memref<1x64xf32, #tpu.memory_space<vmem>>, vector<1x64xf32>
    %14 = vector.broadcast %13 : vector<1x64xf32> to vector<8x64xf32>
    %15 = arith.addf %12, %14 : vector<8x64xf32>
    %cst_12 = arith.constant 0.000000e+00 : f32
    %16 = vector.broadcast %cst_12 : f32 to vector<8x64xf32>
    %17 = arith.cmpf oge, %15, %16 : vector<8x64xf32>
    %cst_13 = arith.constant 0.00999999977 : f32
    %18 = vector.broadcast %cst_13 : f32 to vector<8x64xf32>
    %19 = arith.mulf %18, %15 : vector<8x64xf32>
    %20 = arith.select %17, %15, %19 : vector<8x64xi1>, vector<8x64xf32>
    %c0_14 = arith.constant 0 : index
    %c0_15 = arith.constant 0 : index
    %21 = vector.load %arg6[%c0_14, %c0_15] : memref<64x64xf32, #tpu.memory_space<vmem>>, vector<64x64xf32>
    %cst_16 = arith.constant dense<0.000000e+00> : vector<8x64xf32>
    %22 = tpu.matmul %20, %21, %cst_16 {dimension_numbers = #tpu.dot_dimension_numbers<[1], [0], [0], [1], [0, 0, 1, 1], [], []>} : vector<8x64xf32>, vector<64x64xf32>, vector<8x64xf32> -> vector<8x64xf32>
    %c0_17 = arith.constant 0 : index
    %c0_18 = arith.constant 0 : index
    %23 = vector.load %arg7[%c0_17, %c0_18] : memref<1x64xf32, #tpu.memory_space<vmem>>, vector<1x64xf32>
    %24 = vector.broadcast %23 : vector<1x64xf32> to vector<8x64xf32>
    %25 = arith.addf %22, %24 : vector<8x64xf32>
    %cst_19 = arith.constant 0.000000e+00 : f32
    %26 = vector.broadcast %cst_19 : f32 to vector<8x64xf32>
    %27 = arith.cmpf oge, %25, %26 : vector<8x64xf32>
    %cst_20 = arith.constant 0.00999999977 : f32
    %28 = vector.broadcast %cst_20 : f32 to vector<8x64xf32>
    %29 = arith.mulf %28, %25 : vector<8x64xf32>
    %30 = arith.select %27, %25, %29 : vector<8x64xi1>, vector<8x64xf32>
    %c0_21 = arith.constant 0 : index
    %c0_22 = arith.constant 0 : index
    %31 = vector.load %arg8[%c0_21, %c0_22] : memref<64x128xf32, #tpu.memory_space<vmem>>, vector<64x128xf32>
    %cst_23 = arith.constant dense<0.000000e+00> : vector<8x128xf32>
    %32 = tpu.matmul %30, %31, %cst_23 {dimension_numbers = #tpu.dot_dimension_numbers<[1], [0], [0], [1], [0, 0, 1, 1], [], []>} : vector<8x64xf32>, vector<64x128xf32>, vector<8x128xf32> -> vector<8x128xf32>
    %c0_24 = arith.constant 0 : index
    %c0_25 = arith.constant 0 : index
    %33 = vector.load %arg9[%c0_24, %c0_25] : memref<1x128xf32, #tpu.memory_space<vmem>>, vector<1x128xf32>
    %34 = vector.broadcast %33 : vector<1x128xf32> to vector<8x128xf32>
    %35 = arith.addf %32, %34 : vector<8x128xf32>
    %36 = vector.extract_strided_slice %35 {offsets = [0, 127], sizes = [8, 1], strides = [1, 1]} : vector<8x128xf32> to vector<8x1xf32>
    %cst_26 = arith.constant dense<0.000000e+00> : vector<8xf32>
    %37 = vector.multi_reduction <add>, %35, %cst_26 [1] : vector<8x128xf32> to vector<8xf32>
    %38 = vector.shape_cast %37 : vector<8xf32> to vector<8x1xf32>
    %39 = arith.subf %38, %36 : vector<8x1xf32>
    %cst_27 = arith.constant 1.250000e-01 : f32
    %40 = vector.broadcast %cst_27 : f32 to vector<8x1xf32>
    %41 = arith.mulf %39, %40 : vector<8x1xf32>
    %42 = vector.broadcast %41 : vector<8x1xf32> to vector<8x128xf32>
    %43 = arith.subf %35, %42 : vector<8x128xf32>
    %44 = vector.broadcast %36 : vector<8x1xf32> to vector<8x128xf32>
    %45 = arith.addf %44, %43 : vector<8x128xf32>
    %c0_28 = arith.constant 0 : index
    %c0_29 = arith.constant 0 : index
    %46 = vector.load %arg10[%c0_28, %c0_29] : memref<8x128xf32, #tpu.memory_space<vmem>>, vector<8x128xf32>
    tpu.vector_store %arg10[%c0_28, %c0_29], %45 {strides = array<i32>} : memref<8x128xf32, #tpu.memory_space<vmem>>, vector<8x128xf32>,
    return
  }
  func.func @transform_0(%arg0: i32) -> (i32, i32) {
    %c0_i32 = arith.constant 0 : i32
    %c0_i32_0 = arith.constant 0 : i32
    return %arg0, %c0_i32 : i32, i32
  }
  func.func @transform_1(%arg0: i32) -> (i32, i32) {
    %c0_i32 = arith.constant 0 : i32
    %c0_i32_0 = arith.constant 0 : i32
    %c0_i32_1 = arith.constant 0 : i32
    return %c0_i32, %c0_i32_0 : i32, i32
  }
  func.func @transform_2(%arg0: i32) -> (i32, i32) {
    %c0_i32 = arith.constant 0 : i32
    %c0_i32_0 = arith.constant 0 : i32
    %c0_i32_1 = arith.constant 0 : i32
    return %c0_i32, %c0_i32_0 : i32, i32
  }
  func.func @transform_3(%arg0: i32) -> (i32, i32) {
    %c0_i32 = arith.constant 0 : i32
    %c0_i32_0 = arith.constant 0 : i32
    %c0_i32_1 = arith.constant 0 : i32
    return %c0_i32, %c0_i32_0 : i32, i32
  }
  func.func @transform_4(%arg0: i32) -> (i32, i32) {
    %c0_i32 = arith.constant 0 : i32
    %c0_i32_0 = arith.constant 0 : i32
    %c0_i32_1 = arith.constant 0 : i32
    return %c0_i32, %c0_i32_0 : i32, i32
  }
  func.func @transform_5(%arg0: i32) -> (i32, i32) {
    %c0_i32 = arith.constant 0 : i32
    %c0_i32_0 = arith.constant 0 : i32
    %c0_i32_1 = arith.constant 0 : i32
    return %c0_i32, %c0_i32_0 : i32, i32
  }
  func.func @transform_6(%arg0: i32) -> (i32, i32) {
    %c0_i32 = arith.constant 0 : i32
    %c0_i32_0 = arith.constant 0 : i32
    %c0_i32_1 = arith.constant 0 : i32
    return %c0_i32, %c0_i32_0 : i32, i32
  }
  func.func @transform_7(%arg0: i32) -> (i32, i32) {
    %c0_i32 = arith.constant 0 : i32
    %c0_i32_0 = arith.constant 0 : i32
    %c0_i32_1 = arith.constant 0 : i32
    return %c0_i32, %c0_i32_0 : i32, i32
  }
  func.func @transform_8(%arg0: i32) -> (i32, i32) {
    %c0_i32 = arith.constant 0 : i32
    %c0_i32_0 = arith.constant 0 : i32
    %c0_i32_1 = arith.constant 0 : i32
    return %c0_i32, %c0_i32_0 : i32, i32
  }
  func.func @transform_9(%arg0: i32) -> (i32, i32) {
    %c0_i32 = arith.constant 0 : i32
    %c0_i32_0 = arith.constant 0 : i32
    return %arg0, %c0_i32 : i32, i32
  }
}

</mosaic_0001>

<llo_original>
// kernel: tpu_custom_call.1
$region0: #{tpu_custom_call.1}
  #allocation0 [shape = 'u32[]', space=smem, size = 0x4, offset = 0x4, fixed_abs, tag = 'smem constant byte address 0x4 - core index']
  #allocation1 [shape = 'u32[72,128]{1,0:T(1,128)}', space=vmem, size = 0x9000, scoped, tag = 'internal scratch']
  %s0 = inlined_call_operand.hbm [shape: f32[8,16], index: 0, kind: input, shape index: {}]
  %s1 = inlined_call_operand.hbm [shape: f32[16,32], index: 1, kind: input, shape index: {}]
  %s2 = inlined_call_operand.vmem [shape: f32[1,32], index: 2, kind: input, shape index: {}]
  %s3 = inlined_call_operand.hbm [shape: f32[32,64], index: 3, kind: input, shape index: {}]
  %s4 = inlined_call_operand.vmem [shape: f32[1,64], index: 4, kind: input, shape index: {}]
  %s5 = inlined_call_operand.hbm [shape: f32[64,64], index: 5, kind: input, shape index: {}]
  %s6 = inlined_call_operand.vmem [shape: f32[1,64], index: 6, kind: input, shape index: {}]
  %s7 = inlined_call_operand.hbm [shape: f32[64,128], index: 7, kind: input, shape index: {}]
  %s8 = inlined_call_operand.vmem [shape: f32[1,128], index: 8, kind: input, shape index: {}]
  %s9 = inlined_call_operand.hbm [shape: f32[8,128], index: 9, kind: output, shape index: {}]
  %s10 = sld [smem:[#allocation0]]
  $region66: #{tpu_custom_call.1} parent=0
    _
  %s12 = ssub.s32 1, %s10
  %s13 = scalar_select 0, %s12, %s10
  $region1: #{tpu_custom_call.1} parent=0
    #allocation2 [shape = 'u8[4096]{0}', space=vmem, size = 0x1000, scoped, tag = 'input window, operand 0, single buffered']
    #allocation3 [shape = 's32[1]{0}', space=sflag, size = 0x4, scoped, tag = 'scoped memory for tpu_custom_call.1']
    #allocation4 [shape = 's32[1]{0}', space=sflag, size = 0x4, scoped, tag = 'scoped memory for tpu_custom_call.1']
    #allocation5 [shape = 'u8[8192]{0}', space=vmem, size = 0x2000, scoped, tag = 'input window, operand 1, single buffered']
    #allocation6 [shape = 's32[1]{0}', space=sflag, size = 0x4, scoped, tag = 'scoped memory for tpu_custom_call.1']
    #allocation7 [shape = 'u8[16384]{0}', space=vmem, size = 0x4000, scoped, tag = 'input window, operand 3, single buffered']
    #allocation8 [shape = 'u8[32768]{0}', space=vmem, size = 0x8000, scoped, tag = 'input window, operand 5, single buffered']
    #allocation9 [shape = 's32[1]{0}', space=sflag, size = 0x4, scoped, tag = 'scoped memory for tpu_custom_call.1']
    #allocation10 [shape = 'u8[32768]{0}', space=vmem, size = 0x8000, scoped, tag = 'input window, operand 7, single buffered']
    #allocation11 [shape = 'u8[4096]{0}', space=vmem, size = 0x1000, scoped, tag = 'output window, operand 0, single buffered']
    %14 = vsyncpa [#allocation3], 0
    %15 = vsyncpa [#allocation6], 0
    %16 = vsyncpa [#allocation9], 0
    %17 = vsyncpa [#allocation4], 0
    // Predicated region
    $region2: #{tpu_custom_call.1} parent=1 // pred_check
      _
    $region3: #{tpu_custom_call.1} parent=1 // pred_check_branch
      %19 = sbr.rel (0) target = $region5
    $region4: #{tpu_custom_call.1} parent=1 // pred_region
      %21 = vsyncadd [#allocation3], 0
      %s23 = sshll.u32 %s0, 4
      %s24 = int_to_ptr.hbm [resolvable:$true] %s23
      %s25 = sshll.u32 [#allocation2], 4
      %s26 = int_to_ptr.vmem [resolvable:$true] %s25
      %28 = dma.hbm_to_vmem [thread:$0]  %s24, 128, %s26, [#allocation3]
    $region5: #{tpu_custom_call.1} parent=1 // pred_fallthru
      _
    // Predicated region
    $region6: #{tpu_custom_call.1} parent=1 // pred_check
      _
    $region7: #{tpu_custom_call.1} parent=1 // pred_check_branch
      %30 = sbr.rel (0) target = $region9
    $region8: #{tpu_custom_call.1} parent=1 // pred_region
      %32 = vsyncadd [#allocation6], 0
      %s33 = sshll.u32 %s1, 4
      %s34 = int_to_ptr.hbm [resolvable:$true] %s33
      %s35 = sshll.u32 [#allocation5], 4
      %s36 = int_to_ptr.vmem [resolvable:$true] %s35
      %41 = dma.hbm_to_vmem [thread:$0]  %s34, 256, %s36, [#allocation6], 128, 128, 8
    $region9: #{tpu_custom_call.1} parent=1 // pred_fallthru
      _
    // Predicated region
    $region10: #{tpu_custom_call.1} parent=1 // pred_check
      _
    $region11: #{tpu_custom_call.1} parent=1 // pred_check_branch
      %43 = sbr.rel (0) target = $region13
    $region12: #{tpu_custom_call.1} parent=1 // pred_region
      _
    $region13: #{tpu_custom_call.1} parent=1 // pred_fallthru
      _
    // Predicated region
    $region14: #{tpu_custom_call.1} parent=1 // pred_check
      _
    $region15: #{tpu_custom_call.1} parent=1 // pred_check_branch
      %45 = sbr.rel (0) target = $region17
    $region16: #{tpu_custom_call.1} parent=1 // pred_region
      %47 = vsyncadd [#allocation6], 0
      %s48 = sshll.u32 %s3, 4
      %s49 = int_to_ptr.hbm [resolvable:$true] %s48
      %s50 = sshll.u32 [#allocation7], 4
      %s51 = int_to_ptr.vmem [resolvable:$true] %s50
      %56 = dma.hbm_to_vmem [thread:$0]  %s49, 512, %s51, [#allocation6], 128, 128, 8
    $region17: #{tpu_custom_call.1} parent=1 // pred_fallthru
      _
    // Predicated region
    $region18: #{tpu_custom_call.1} parent=1 // pred_check
      _
    $region19: #{tpu_custom_call.1} parent=1 // pred_check_branch
      %58 = sbr.rel (0) target = $region21
    $region20: #{tpu_custom_call.1} parent=1 // pred_region
      _
    $region21: #{tpu_custom_call.1} parent=1 // pred_fallthru
      _
    // Predicated region
    $region22: #{tpu_custom_call.1} parent=1 // pred_check
      _
    $region23: #{tpu_custom_call.1} parent=1 // pred_check_branch
      %60 = sbr.rel (0) target = $region25
    $region24: #{tpu_custom_call.1} parent=1 // pred_region
      %62 = vsyncadd [#allocation9], 0
      %s63 = sshll.u32 %s5, 4
      %s64 = int_to_ptr.hbm [resolvable:$true] %s63
      %s65 = sshll.u32 [#allocation8], 4
      %s66 = int_to_ptr.vmem [resolvable:$true] %s65
      %71 = dma.hbm_to_vmem [thread:$0]  %s64, 1024, %s66, [#allocation9], 128, 128, 8
    $region25: #{tpu_custom_call.1} parent=1 // pred_fallthru
      _
    // Predicated region
    $region26: #{tpu_custom_call.1} parent=1 // pred_check
      _
    $region27: #{tpu_custom_call.1} parent=1 // pred_check_branch
      %73 = sbr.rel (0) target = $region29
    $region28: #{tpu_custom_call.1} parent=1 // pred_region
      _
    $region29: #{tpu_custom_call.1} parent=1 // pred_fallthru
      _
    // Predicated region
    $region30: #{tpu_custom_call.1} parent=1 // pred_check
      _
    $region31: #{tpu_custom_call.1} parent=1 // pred_check_branch
      %75 = sbr.rel (0) target = $region33
    $region32: #{tpu_custom_call.1} parent=1 // pred_region
      %77 = vsyncadd [#allocation9], 0
      %s78 = sshll.u32 %s7, 4
      %s79 = int_to_ptr.hbm [resolvable:$true] %s78
      %s80 = sshll.u32 [#allocation10], 4
      %s81 = int_to_ptr.vmem [resolvable:$true] %s80
      %86 = dma.hbm_to_vmem [thread:$0]  %s79, 1024, %s81, [#allocation9], 128, 128, 8
    $region33: #{tpu_custom_call.1} parent=1 // pred_fallthru
      _
    // Predicated region
    $region34: #{tpu_custom_call.1} parent=1 // pred_check
      _
    $region35: #{tpu_custom_call.1} parent=1 // pred_check_branch
      %88 = sbr.rel (0) target = $region37
    $region36: #{tpu_custom_call.1} parent=1 // pred_region
      _
    $region37: #{tpu_custom_call.1} parent=1 // pred_fallthru
      _
    // Predicated region
    $region38: #{tpu_custom_call.1} parent=1 // pred_check
      _
    $region39: #{tpu_custom_call.1} parent=1 // pred_check_branch
      %90 = sbr.rel (0) target = $region41
    $region40: #{tpu_custom_call.1} parent=1 // pred_region
      %92 = dma.done [#allocation3], 128
    $region41: #{tpu_custom_call.1} parent=1 // pred_fallthru
      _
    // Predicated region
    $region42: #{tpu_custom_call.1} parent=1 // pred_check
      _
    $region43: #{tpu_custom_call.1} parent=1 // pred_check_branch
      %94 = sbr.rel (0) target = $region45
    $region44: #{tpu_custom_call.1} parent=1 // pred_region
      %96 = dma.done [#allocation6], 256
    $region45: #{tpu_custom_call.1} parent=1 // pred_fallthru
      _
    // Predicated region
    $region46: #{tpu_custom_call.1} parent=1 // pred_check
      _
    $region47: #{tpu_custom_call.1} parent=1 // pred_check_branch
      %98 = sbr.rel (0) target = $region49
    $region48: #{tpu_custom_call.1} parent=1 // pred_region
      %100 = dma.done [#allocation6], 512
    $region49: #{tpu_custom_call.1} parent=1 // pred_fallthru
      _
    // Predicated region
    $region50: #{tpu_custom_call.1} parent=1 // pred_check
      _
    $region51: #{tpu_custom_call.1} parent=1 // pred_check_branch
      %102 = sbr.rel (0) target = $region53
    $region52: #{tpu_custom_call.1} parent=1 // pred_region
      %104 = dma.done [#allocation9], 1024
    $region53: #{tpu_custom_call.1} parent=1 // pred_fallthru
      _
    // Predicated region
    $region54: #{tpu_custom_call.1} parent=1 // pred_check
      _
    $region55: #{tpu_custom_call.1} parent=1 // pred_check_branch
      %106 = sbr.rel (0) target = $region57
    $region56: #{tpu_custom_call.1} parent=1 // pred_region
      %108 = dma.done [#allocation9], 1024
    $region57: #{tpu_custom_call.1} parent=1 // pred_fallthru
      _
    %v109 = vld [vmem:[#allocation2] sm:$0xff]
    %v110 = vld [vmem:[#allocation5] sm:$0xff]
    %v111 = vld [vmem:[#allocation5 + $0x8] sm:$0xff]
    %v112 = vld [vmem:[%s2] sm:$0x1]
    %v114 = vperm.slane %v112, 0
    %vm116 = vcmask 130048
    %v118 = vsel %vm116, %v109, 0
    %120 = vmatpush.msra.mxu0 0.0
    %121 = vmatpush.msra.mxu0 0.0
    %122 = vmatpush.msra.mxu0 0.0
    %123 = vmatpush.msra.mxu0 0.0
    %124 = vmatpush.msra.mxu0 0.0
    %125 = vmatpush.msra.mxu0 0.0
    %126 = vmatpush.msra.mxu0 0.0
    %127 = vmatpush.msra.mxu0 0.0
    %128 = vmatpush.msra.mxu0 0.0
    %129 = vmatpush.msra.mxu0 0.0
    %130 = vmatpush.msra.mxu0 0.0
    %131 = vmatpush.msra.mxu0 0.0
    %132 = vmatpush.msra.mxu0 0.0
    %133 = vmatpush.msra.mxu0 0.0
    %134 = vmatpush.msra.mxu0 %v111
    %135 = vmatpush.msra.mxu0 %v110
    %136 = vmatmul.f32.gmra.mxu0 %v118
    %v137 = vpop.f32.mrf.mxu0
    %v138 = vadd.f32 %v114, %v137
    %139 = vdwg.mxu0
    %vm140 = vcmp.ge.f32.partialorder %v138, 0.0
    %v141 = vmul.f32 %v138, 0.01
    %v142 = vsel %vm140, %v138, %v141
    %v143 = vld [vmem:[#allocation7] sm:$0xff]
    %v144 = vld [vmem:[#allocation7 + $0x8] sm:$0xff]
    %v145 = vld [vmem:[#allocation7 + $0x10] sm:$0xff]
    %v146 = vld [vmem:[#allocation7 + $0x18] sm:$0xff]
    %v147 = vld [vmem:[%s4] sm:$0x1]
    %v149 = vperm.slane %v147, 0
    %vm151 = vcmask 261120
    %v153 = vsel %vm151, %v142, 0
    %155 = vmatpush.msra.mxu0 0.0
    %156 = vmatpush.msra.mxu0 0.0
    %157 = vmatpush.msra.mxu0 0.0
    %158 = vmatpush.msra.mxu0 0.0
    %159 = vmatpush.msra.mxu0 0.0
    %160 = vmatpush.msra.mxu0 0.0
    %161 = vmatpush.msra.mxu0 0.0
    %162 = vmatpush.msra.mxu0 0.0
    %163 = vmatpush.msra.mxu0 0.0
    %164 = vmatpush.msra.mxu0 0.0
    %165 = vmatpush.msra.mxu0 0.0
    %166 = vmatpush.msra.mxu0 0.0
    %167 = vmatpush.msra.mxu0 %v146
    %168 = vmatpush.msra.mxu0 %v145
    %169 = vmatpush.msra.mxu0 %v144
    %170 = vmatpush.msra.mxu0 %v143
    %171 = vmatmul.f32.gmra.mxu0 %v153
    %v172 = vpop.f32.mrf.mxu0
    %v173 = vadd.f32 %v149, %v172
    %174 = vdwg.mxu0
    %vm175 = vcmp.ge.f32.partialorder %v173, 0.0
    %v176 = vmul.f32 %v173, 0.01
    %v177 = vsel %vm175, %v173, %v176
    %v178 = vld [vmem:[#allocation8] sm:$0xff]
    %v179 = vld [vmem:[#allocation8 + $0x8] sm:$0xff]
    %v180 = vld [vmem:[#allocation8 + $0x10] sm:$0xff]
    %v181 = vld [vmem:[#allocation8 + $0x18] sm:$0xff]
    %v182 = vld [vmem:[#allocation8 + $0x20] sm:$0xff]
    %v183 = vld [vmem:[#allocation8 + $0x28] sm:$0xff]
    %v184 = vld [vmem:[#allocation8 + $0x30] sm:$0xff]
    %v185 = vld [vmem:[#allocation8 + $0x38] sm:$0xff]
    %v186 = vld [vmem:[%s6] sm:$0x1]
    %v188 = vperm.slane %v186, 0
    %vm190 = vcmask 523264
    %v192 = vsel %vm190, %v177, 0
    %194 = vmatpush.msra.mxu0 0.0
    %195 = vmatpush.msra.mxu0 0.0
    %196 = vmatpush.msra.mxu0 0.0
    %197 = vmatpush.msra.mxu0 0.0
    %198 = vmatpush.msra.mxu0 0.0
    %199 = vmatpush.msra.mxu0 0.0
    %200 = vmatpush.msra.mxu0 0.0
    %201 = vmatpush.msra.mxu0 0.0
    %202 = vmatpush.msra.mxu0 %v185
    %203 = vmatpush.msra.mxu0 %v184
    %204 = vmatpush.msra.mxu0 %v183
    %205 = vmatpush.msra.mxu0 %v182
    %206 = vmatpush.msra.mxu0 %v181
    %207 = vmatpush.msra.mxu0 %v180
    %208 = vmatpush.msra.mxu0 %v179
    %209 = vmatpush.msra.mxu0 %v178
    %210 = vmatmul.f32.gmra.mxu0 %v192
    %v211 = vpop.f32.mrf.mxu0
    %v212 = vadd.f32 %v188, %v211
    %213 = vdwg.mxu0
    %vm214 = vcmp.ge.f32.partialorder %v212, 0.0
    %v215 = vmul.f32 %v212, 0.01
    %v216 = vsel %vm214, %v212, %v215
    %v217 = vld [vmem:[#allocation10] sm:$0xff]
    %v218 = vld [vmem:[#allocation10 + $0x8] sm:$0xff]
    %v219 = vld [vmem:[#allocation10 + $0x10] sm:$0xff]
    %v220 = vld [vmem:[#allocation10 + $0x18] sm:$0xff]
    %v221 = vld [vmem:[#allocation10 + $0x20] sm:$0xff]
    %v222 = vld [vmem:[#allocation10 + $0x28] sm:$0xff]
    %v223 = vld [vmem:[#allocation10 + $0x30] sm:$0xff]
    %v224 = vld [vmem:[#allocation10 + $0x38] sm:$0xff]
    %v225 = vld [vmem:[%s8] sm:$0x1]
    %v227 = vperm.slane %v225, 0
    %v230 = vsel %vm190, %v216, 0
    %232 = vmatpush.msra.mxu0 0.0
    %233 = vmatpush.msra.mxu0 0.0
    %234 = vmatpush.msra.mxu0 0.0
    %235 = vmatpush.msra.mxu0 0.0
    %236 = vmatpush.msra.mxu0 0.0
    %237 = vmatpush.msra.mxu0 0.0
    %238 = vmatpush.msra.mxu0 0.0
    %239 = vmatpush.msra.mxu0 0.0
    %240 = vmatpush.msra.mxu0 %v224
    %241 = vmatpush.msra.mxu0 %v223
    %242 = vmatpush.msra.mxu0 %v222
    %243 = vmatpush.msra.mxu0 %v221
    %244 = vmatpush.msra.mxu0 %v220
    %245 = vmatpush.msra.mxu0 %v219
    %246 = vmatpush.msra.mxu0 %v218
    %247 = vmatpush.msra.mxu0 %v217
    %248 = vmatmul.f32.gmra.mxu0 %v230
    %v249 = vpop.f32.mrf.mxu0
    %v250 = vadd.f32 %v227, %v249
    %251 = vdwg.mxu0
    %252 = vadd.xlane.f32.xlu0 %v250
    %v253 = vpop.xlane.xlu0 %252
    %v254 = vsub.f32 %v253, %v250
    %v255 = vmul.f32 %v254, 0.125
    %257 = vset.pattern.permute.xlu0 127
    %258 = vperm.xlu0 %257, %v255
    %v259 = vpop.permute.xlu0 %258
    %v261 = vsub.f32 %v250, %v259
    %263 = vset.pattern.permute.xlu0 127
    %264 = vperm.xlu0 %263, %v250
    %v265 = vpop.permute.xlu0 %264
    %v267 = vadd.f32 %v265, %v261
    %268 = vst [vmem:[#allocation11] sm:$0xff] %v267
    // Predicated region
    $region58: #{tpu_custom_call.1} parent=1 // pred_check
      _
    $region59: #{tpu_custom_call.1} parent=1 // pred_check_branch
      %270 = sbr.rel (0) target = $region61
    $region60: #{tpu_custom_call.1} parent=1 // pred_region
      %272 = vsyncadd [#allocation4], 0
      %s274 = sshll.u32 [#allocation11], 4
      %s275 = int_to_ptr.vmem [resolvable:$true] %s274
      %s276 = sshll.u32 %s9, 4
      %s277 = int_to_ptr.hbm [resolvable:$true] %s276
      %279 = dma.vmem_to_hbm [thread:$0]  %s275, 128, %s277, [#allocation4]
    $region61: #{tpu_custom_call.1} parent=1 // pred_fallthru
      _
    // Predicated region
    $region62: #{tpu_custom_call.1} parent=1 // pred_check
      _
    $region63: #{tpu_custom_call.1} parent=1 // pred_check_branch
      %281 = sbr.rel (0) target = $region65
    $region64: #{tpu_custom_call.1} parent=1 // pred_region
      %283 = dma.done [#allocation4], 128
    $region65: #{tpu_custom_call.1} parent=1 // pred_fallthru
      _
    %284 = vsyncpa [#allocation3], 1
    %285 = vsyncpa [#allocation6], 1
    %286 = vsyncpa [#allocation9], 1
    %287 = vsyncpa [#allocation4], 1

</llo_original>
